<compile_context>
chip_gen: v5e
topology: v5e:2x2
jax: 0.10.0
libtpu: 0.0.40
codegen_flags: <defaults>
</compile_context>

<pallas_src>
import jax
import jax.numpy as jnp
from jax.experimental import pallas as pl
from jax.experimental.pallas import tpu as pltpu

_LANES = 128


def _make_logreg_kernel(per_row: int):
    if per_row > 1:
        def kernel(x_ref, w_ref, b_ref, o_ref):
            # x_ref: (block_rows, 128) VMEM      w_ref: (128, per_row) VMEM
            # b_ref: (1,) SMEM                   o_ref: (block_rows, per_row) VMEM
            # Block-diagonal selector -> per-sample dot products on the MXU,
            # lane-dense logits, single bias add / exp / store.
            logits = jnp.dot(x_ref[...], w_ref[...],
                             preferred_element_type=jnp.float32) + b_ref[0]
            # Same form as the module/reference; exp(-x) overflow flushes to 0.
            o_ref[...] = 1.0 / (1.0 + jnp.exp(-logits))
    else:
        def kernel(x_ref, w_ref, b_ref, o_ref):
            # Unpacked path (D >= 128 or D does not divide 128):
            # VPU multiply + XLU lane reduction, one row of output per sample.
            logits = jnp.sum(x_ref[...] * w_ref[...], axis=1,
                             keepdims=True) + b_ref[0]
            o_ref[...] = 1.0 / (1.0 + jnp.exp(-logits))
    return kernel


def _tile_bytes_for_device() -> int:
    """x-tile target: ~2 MiB (v5e/other), 4 MiB (v6e), 8 MiB (v7x).

    Double-buffered this stays inside every generation's default scoped VMEM
    (16 / 32 / 32 MiB) with room for the small weight/output/logit buffers.
    """
    try:
        kind = jax.devices()[0].device_kind.lower()
    except Exception:  # pragma: no cover
        return 2 * 1024 * 1024
    if "7" in kind:
        return 8 * 1024 * 1024
    if "6" in kind:
        return 4 * 1024 * 1024
    return 2 * 1024 * 1024


def logistic_regression_forward(x, weight, bias, *, block_rows=None):
    """sigmoid(x @ weight.T + bias): forward of nn.Linear(input_dim, 1) + nn.Sigmoid."""
    x = jnp.asarray(x, jnp.float32)
    B, D = x.shape
    w = jnp.asarray(weight, jnp.float32).reshape(-1)
    assert w.shape == (D,)
    b = jnp.asarray(bias, jnp.float32).reshape((1,))

    # Lane-pack any D that divides 128: `per_row` samples share one 128-lane row.
    per_row = _LANES // D if (D < _LANES and _LANES % D == 0) else 1
    lane_w = per_row * D
    lane_padded = ((lane_w + _LANES - 1) // _LANES) * _LANES  # VMEM lane footprint

    # Align the batch to per_row only (tiny; at most per_row-1 extra samples).
    # TODO(synk): to avoid even this small pad's full-array copy, route the
    # < per_row tail samples through a plain-JAX epilogue instead.
    pad = (-B) % per_row
    if pad:
        x = jnp.concatenate([x, jnp.zeros((pad, D), x.dtype)], axis=0)
    rows = (B + pad) // per_row
    x2d = x.reshape(rows, lane_w)  # contiguous reshape: no data movement

    # Row tile: multiple of 8 sublanes, sized from the lane-padded VMEM footprint.
    if block_rows is None:
        tile_bytes = _tile_bytes_for_device()
        block_rows = max(8, (tile_bytes // (lane_padded * 4)) // 8 * 8)
        # Small batches: force >= 2 grid steps so v7x's second TensorCore gets work.
        if block_rows >= rows and rows > 8:
            block_rows = ((-(-rows // 2) + 7) // 8) * 8
        block_rows = min(block_rows, ((rows + 7) // 8) * 8)
    assert block_rows > 0 and block_rows % 8 == 0

    num_tiles = (rows + block_rows - 1) // block_rows  # ragged tail masked by Pallas

    # Weight operand:
    #  * packed: (lane_w, per_row) block-diagonal selector -> MXU segmented dot.
    #  * unpacked: (1, D) broadcast row -> VPU multiply + lane reduction.
    if per_row > 1:
        w_arr = jnp.kron(jnp.eye(per_row, dtype=jnp.float32), w.reshape(D, 1))
        w_block = (lane_w, per_row)
    else:
        w_arr = w.reshape(1, D)
        w_block = (1, D)

    # TODO(synk): for very large input_dim (x tile over the VMEM budget even at
    # block_rows=8) add a second "arbitrary" grid axis over D with a VMEM
    # accumulator instead of shrinking the row tile further.

    out = pl.pallas_call(
        _make_logreg_kernel(per_row),
        out_shape=jax.ShapeDtypeStruct((rows, per_row), jnp.float32),
        grid_spec=pltpu.PrefetchScalarGridSpec(
            num_scalar_prefetch=0,
            grid=(num_tiles,),
            in_specs=[
                pl.BlockSpec((block_rows, lane_w), lambda i: (i, 0)),  # x (pipelined)
                pl.BlockSpec(w_block, lambda i: (0, 0)),               # weight (resident)
                pl.BlockSpec(memory_space=pltpu.MemorySpace.SMEM),     # bias scalar
            ],
            out_specs=pl.BlockSpec((block_rows, per_row), lambda i: (i, 0)),
        ),
        compiler_params=pltpu.CompilerParams(
            dimension_semantics=("parallel",),  # batch tiles shard across TCs on v7x
        ),
    )(x2d, w_arr, b)

    return out.reshape(rows * per_row, 1)[:B]


def _reference(x, weight, bias):
    # Exact f32 elementwise reference, same math as the module.
    w = jnp.asarray(weight, jnp.float32).reshape(1, -1)
    b = jnp.asarray(bias, jnp.float32).reshape(1, 1)
    logits = jnp.sum(jnp.asarray(x, jnp.float32) * w, axis=-1, keepdims=True) + b
    return 1.0 / (1.0 + jnp.exp(-logits))


if __name__ == "__main__":
    root = jax.random.PRNGKey(0)

    def run_case(key, batch, input_dim, block_rows=None):
        kx, kw, kb = jax.random.split(key, 3)
        bound = 1.0 / (input_dim ** 0.5)
        x = jax.random.normal(kx, (batch, input_dim), dtype=jnp.float32)
        # nn.Linear default init: U(-1/sqrt(D), 1/sqrt(D)).
        w = jax.random.uniform(kw, (1, input_dim), minval=-bound, maxval=bound,
                               dtype=jnp.float32)
        b = jax.random.uniform(kb, (1,), minval=-bound, maxval=bound,
                               dtype=jnp.float32)
        out = jax.block_until_ready(
            logistic_regression_forward(x, w, b, block_rows=block_rows))
        ref = _reference(x, w, b)
        assert out.shape == (batch, 1)
        assert jnp.allclose(out, ref, atol=5e-6, rtol=5e-6), \
            float(jnp.max(jnp.abs(out - ref)))

    keys = jax.random.split(root, 4)
    # Small main case: lane-packed (per_row=4), single tile.
    run_case(keys[0], batch=8, input_dim=32)
    # Ragged batch, forced multi-tile grid with a partial tail tile (no full pad).
    run_case(keys[1], batch=50, input_dim=32, block_rows=8)
    # Tiny feature dim: extended lane-packing (per_row=32).
    run_case(keys[2], batch=256, input_dim=4)
    # Unpacked path (D does not divide 128), auto tile split into >=2 grid steps.
    run_case(keys[3], batch=20, input_dim=200)

    print("KERNEL_OK")
</pallas_src>

<mosaic_0001>
module attributes {stable_mosaic.version = 11 : i64} {
  func.func @kernel(%arg0: i32, %arg1: memref<8x128xf32, #tpu.memory_space<vmem>>, %arg2: memref<128x4xf32, #tpu.memory_space<vmem>>, %arg3: memref<1xf32, #tpu.memory_space<smem>>, %arg4: memref<8x4xf32, #tpu.memory_space<vmem>>) attributes {dimension_semantics = [#tpu.dimension_semantics<parallel>], iteration_bounds = array<i64: 1>, scalar_prefetch = 0 : i64, scratch_operands = 0 : i64, tpu.core_type = #tpu.core_type<tc>, window_params = [{transform_indices = @transform_0, window_bounds = array<i64: 8, 128>}, {pipeline_mode = #tpu.pipeline_mode<synchronous>, transform_indices = @transform_1, window_bounds = array<i64: 128, 4>}, {transform_indices = @transform_2, window_bounds = array<i64: 1>}, {transform_indices = @transform_3, window_bounds = array<i64: 8, 4>}]} {
    %c0 = arith.constant 0 : index
    %c0_0 = arith.constant 0 : index
    %0 = vector.load %arg1[%c0, %c0_0] : memref<8x128xf32, #tpu.memory_space<vmem>>, vector<8x128xf32>
    %c0_1 = arith.constant 0 : index
    %c0_2 = arith.constant 0 : index
    %1 = vector.load %arg2[%c0_1, %c0_2] : memref<128x4xf32, #tpu.memory_space<vmem>>, vector<128x4xf32>
    %cst = arith.constant dense<0.000000e+00> : vector<8x4xf32>
    %2 = tpu.matmul %0, %1, %cst {dimension_numbers = #tpu.dot_dimension_numbers<[1], [0], [0], [1], [0, 0, 1, 1], [], []>} : vector<8x128xf32>, vector<128x4xf32>, vector<8x4xf32> -> vector<8x4xf32>
    %c0_3 = arith.constant 0 : index
    %3 = memref.load %arg3[%c0_3] : memref<1xf32, #tpu.memory_space<smem>>
    %4 = vector.broadcast %3 : f32 to vector<8x4xf32>
    %5 = arith.addf %2, %4 : vector<8x4xf32>
    %cst_4 = arith.constant 0.000000e+00 : f32
    %6 = vector.broadcast %cst_4 : f32 to vector<8x4xf32>
    %7 = arith.subf %6, %5 : vector<8x4xf32>
    %8 = math.exp %7 : vector<8x4xf32>
    %cst_5 = arith.constant 1.000000e+00 : f32
    %9 = vector.broadcast %cst_5 : f32 to vector<8x4xf32>
    %10 = arith.addf %9, %8 : vector<8x4xf32>
    %cst_6 = arith.constant 1.000000e+00 : f32
    %11 = vector.broadcast %cst_6 : f32 to vector<8x4xf32>
    %12 = arith.divf %11, %10 : vector<8x4xf32>
    %c0_7 = arith.constant 0 : index
    %c0_8 = arith.constant 0 : index
    %13 = vector.load %arg4[%c0_7, %c0_8] : memref<8x4xf32, #tpu.memory_space<vmem>>, vector<8x4xf32>
    tpu.vector_store %arg4[%c0_7, %c0_8], %12 {strides = array<i32>} : memref<8x4xf32, #tpu.memory_space<vmem>>, vector<8x4xf32>,
    return
  }
  func.func @transform_0(%arg0: i32) -> (i32, i32) {
    %c0_i32 = arith.constant 0 : i32
    %c0_i32_0 = arith.constant 0 : i32
    return %arg0, %c0_i32 : i32, i32
  }
  func.func @transform_1(%arg0: i32) -> (i32, i32) {
    %c0_i32 = arith.constant 0 : i32
    %c0_i32_0 = arith.constant 0 : i32
    %c0_i32_1 = arith.constant 0 : i32
    return %c0_i32, %c0_i32_0 : i32, i32
  }
  func.func @transform_2(%arg0: i32) -> i32 {
    %c0_i32 = arith.constant 0 : i32
    %c0_i32_0 = arith.constant 0 : i32
    return %c0_i32 : i32
  }
  func.func @transform_3(%arg0: i32) -> (i32, i32) {
    %c0_i32 = arith.constant 0 : i32
    %c0_i32_0 = arith.constant 0 : i32
    return %arg0, %c0_i32 : i32, i32
  }
}

</mosaic_0001>

<llo_original>
// kernel: tpu_custom_call.1
$region0: #{tpu_custom_call.1}
  #allocation0 [shape = 'u32[]', space=smem, size = 0x4, offset = 0x4, fixed_abs, tag = 'smem constant byte address 0x4 - core index']
  #allocation1 [shape = 'u32[72,128]{1,0:T(1,128)}', space=vmem, size = 0x9000, scoped, tag = 'internal scratch']
  #allocation2 [shape = 'f32[1]{0:T(128)S(6)}', space=smem, size = 0x200, scoped, tag = 'scoped memory for tpu_custom_call.1']
  %s0 = inlined_call_operand.vmem [shape: f32[2,128], index: 0, kind: input, shape index: {}]
  %s1 = inlined_call_operand.vmem [shape: f32[128,4], index: 1, kind: input, shape index: {}]
  %s2 = inlined_call_operand.<no memory space> [shape: f32[1], index: 2, kind: input, shape index: {}]
  %s3 = inlined_call_operand.hbm [shape: f32[2,4], index: 3, kind: output, shape index: {}]
  %s4 = sld [smem:[#allocation0]]
  $region22: #{tpu_custom_call.1} parent=0
    _
  %s6 = ssub.s32 1, %s4
  %s7 = scalar_select 0, %s6, %s4
  %8 = sst [smem:[#allocation2]] %s2
  $region1: #{tpu_custom_call.1} parent=0
    #allocation3 [shape = 'u8[4096]{0}', space=vmem, size = 0x1000, scoped, tag = 'output window, operand 0, single buffered']
    #allocation4 [shape = 's32[1]{0}', space=sflag, size = 0x4, scoped, tag = 'scoped memory for tpu_custom_call.1']
    %9 = vsyncpa [#allocation4], 0
    // Predicated region
    $region2: #{tpu_custom_call.1} parent=1 // pred_check
      _
    $region3: #{tpu_custom_call.1} parent=1 // pred_check_branch
      %11 = sbr.rel (0) target = $region5
    $region4: #{tpu_custom_call.1} parent=1 // pred_region
      _
    $region5: #{tpu_custom_call.1} parent=1 // pred_fallthru
      _
    // Predicated region
    $region6: #{tpu_custom_call.1} parent=1 // pred_check
      _
    $region7: #{tpu_custom_call.1} parent=1 // pred_check_branch
      %13 = sbr.rel (0) target = $region9
    $region8: #{tpu_custom_call.1} parent=1 // pred_region
      _
    $region9: #{tpu_custom_call.1} parent=1 // pred_fallthru
      _
    // Predicated region
    $region10: #{tpu_custom_call.1} parent=1 // pred_check
      _
    $region11: #{tpu_custom_call.1} parent=1 // pred_check_branch
      %15 = sbr.rel (0) target = $region13
    $region12: #{tpu_custom_call.1} parent=1 // pred_region
      _
    $region13: #{tpu_custom_call.1} parent=1 // pred_fallthru
      _
    %v16 = vld [vmem:[%s0] sm:$0xff]
    %v17 = vld [vmem:[%s1] sm:$0xff]
    %v18 = vld [vmem:[%s1 + $0x8] sm:$0xff]
    %v19 = vld [vmem:[%s1 + $0x10] sm:$0xff]
    %v20 = vld [vmem:[%s1 + $0x18] sm:$0xff]
    %v21 = vld [vmem:[%s1 + $0x20] sm:$0xff]
    %v22 = vld [vmem:[%s1 + $0x28] sm:$0xff]
    %v23 = vld [vmem:[%s1 + $0x30] sm:$0xff]
    %v24 = vld [vmem:[%s1 + $0x38] sm:$0xff]
    %v25 = vld [vmem:[%s1 + $0x40] sm:$0xff]
    %v26 = vld [vmem:[%s1 + $0x48] sm:$0xff]
    %v27 = vld [vmem:[%s1 + $0x50] sm:$0xff]
    %v28 = vld [vmem:[%s1 + $0x58] sm:$0xff]
    %v29 = vld [vmem:[%s1 + $0x60] sm:$0xff]
    %v30 = vld [vmem:[%s1 + $0x68] sm:$0xff]
    %v31 = vld [vmem:[%s1 + $0x70] sm:$0xff]
    %v32 = vld [vmem:[%s1 + $0x78] sm:$0xff]
    %s33 = sld [smem:[#allocation2]]
    %v34 = vstv %s33
    %35 = vmatpush.msra.mxu0 %v32
    %36 = vmatpush.msra.mxu0 %v31
    %37 = vmatpush.msra.mxu0 %v30
    %38 = vmatpush.msra.mxu0 %v29
    %39 = vmatpush.msra.mxu0 %v28
    %40 = vmatpush.msra.mxu0 %v27
    %41 = vmatpush.msra.mxu0 %v26
    %42 = vmatpush.msra.mxu0 %v25
    %43 = vmatpush.msra.mxu0 %v24
    %44 = vmatpush.msra.mxu0 %v23
    %45 = vmatpush.msra.mxu0 %v22
    %46 = vmatpush.msra.mxu0 %v21
    %47 = vmatpush.msra.mxu0 %v20
    %48 = vmatpush.msra.mxu0 %v19
    %49 = vmatpush.msra.mxu0 %v18
    %50 = vmatpush.msra.mxu0 %v17
    %51 = vmatmul.f32.gmra.mxu0 %v16
    %v52 = vpop.f32.mrf.mxu0
    %v53 = vadd.f32 %v34, %v52
    %54 = vdwg.mxu0
    %v55 = vsub.f32 0.0, %v53
    %v56 = vmul.f32 %v55, 1.442695
    %v57 = vpow.pop %v56
    %v58 = vadd.f32 %v57, 1.0
    %v59 = vrcp.pop %v58
    %v60 = vmul.f32 %v58, %v59
    %v61 = vsub.f32 1.0, %v60
    %v62 = vmul.f32 %v59, %v61
    %v63 = vadd.f32 %v59, %v62
    %vm64 = vweird.f32 %v58
    %vm65 = vweird.f32 %v59
    %vm66 = vmor %vm64, %vm65
    %v67 = vsel %vm66, %v59, %v63
    %v68 = vand.u32 2147483647, %v58
    %vm69 = vcmp.eq.f32.partialorder %v68, 8.507059e+37
    %v70 = vand.u32 %v58, 2147483648
    %v71 = vor.u32 1.1754944e-38, %v70
    %v72 = vsel %vm69, %v71, %v67
    %v73 = vmul.f32 1.0, %v72
    %vm74 = vcmask 31744
    %75 = vst.msk [vmem:[#allocation3] sm:$0xff] %vm74, %v73
    // Predicated region
    $region14: #{tpu_custom_call.1} parent=1 // pred_check
      _
    $region15: #{tpu_custom_call.1} parent=1 // pred_check_branch
      %77 = sbr.rel (0) target = $region17
    $region16: #{tpu_custom_call.1} parent=1 // pred_region
      %79 = vsyncadd [#allocation4], 96
      %s80 = sshll.u32 [#allocation3], 4
      %s81 = int_to_ptr.vmem [resolvable:$true] %s80
      %s82 = sshll.u32 %s3, 4
      %s83 = int_to_ptr.hbm [resolvable:$true] %s82
      %88 = dma.vmem_to_hbm [thread:$0]  %s81, 32, %s83, [#allocation4], 32, 32, 2
    $region17: #{tpu_custom_call.1} parent=1 // pred_fallthru
      _
    // Predicated region
    $region18: #{tpu_custom_call.1} parent=1 // pred_check
      _
    $region19: #{tpu_custom_call.1} parent=1 // pred_check_branch
      %90 = sbr.rel (0) target = $region21
    $region20: #{tpu_custom_call.1} parent=1 // pred_region
      %92 = dma.done [#allocation4], 128
    $region21: #{tpu_custom_call.1} parent=1 // pred_fallthru
      _
    %93 = vsyncpa [#allocation4], 1

</llo_original>
